<compile_context>
chip_gen: v7x
topology: tpu7x:2x2x1
jax: 0.10.0
libtpu: 0.0.40
codegen_flags: <defaults>
</compile_context>

<pallas_src>
import numpy as np
import jax
import jax.numpy as jnp
from jax.experimental import pallas as pl
from jax.experimental.pallas import tpu as pltpu

KH, KW = 4, 4
C_OUT = 4

# Scoped-VMEM limit requested from Mosaic (safe on v5e/v6e/v7x), and the budget
# the batch-block picker sizes against (leaves headroom for temporaries/spills).
_VMEM_LIMIT_BYTES = 32 * 1024 * 1024
_VMEM_BLOCK_BUDGET_BYTES = 24 * 1024 * 1024


def _conv_relu_kernel(x_ref, conv_ref, relu_ref):
    """x_ref: (NB, H, W) VMEM block (channel dim squeezed by the BlockSpec).
    conv_ref / relu_ref: (NB, C_OUT, Ho, Wo) f32 VMEM blocks (NCHW layout)."""
    x = x_ref[...].astype(jnp.float32)               # cast in VMEM (free on VPU)
    NB, H, W = x.shape
    Ho, Wo = H - KH + 1, W - KW + 1

    # Shared partial sums (hoisted; reused by the +/- channel pairs).
    # Vertical 4-row sums:   V[:, i, :]  = sum_{kh<4} x[:, i+kh, :]   -> (NB, Ho, W)
    V = (x[:, 0:Ho, :] + x[:, 1:Ho + 1, :]
         + x[:, 2:Ho + 2, :] + x[:, 3:Ho + 3, :])
    # Horizontal 4-col sums: Hs[:, :, j] = sum_{kw<4} x[:, :, j+kw]   -> (NB, H, Wo)
    Hs = (x[:, :, 0:Wo] + x[:, :, 1:Wo + 1]
          + x[:, :, 2:Wo + 2] + x[:, :, 3:Wo + 3])

    # filter_1 = outer([1,1,1,1], [-1,-1,1,1])  -> column differences of V
    ch0 = (V[:, :, 2:2 + Wo] + V[:, :, 3:3 + Wo]) - (V[:, :, 0:Wo] + V[:, :, 1:1 + Wo])
    # filter_3 = filter_1.T                      -> row differences of Hs
    ch2 = (Hs[:, 2:2 + Ho, :] + Hs[:, 3:3 + Ho, :]) - (Hs[:, 0:Ho, :] + Hs[:, 1:1 + Ho, :])
    ch1 = -ch0          # filter_2 = -filter_1
    ch3 = -ch2          # filter_4 = -filter_3

    # Per-channel NCHW stores (exact nn.Conv2d cross-correlation, VALID, stride 1).
    conv_ref[:, 0, :, :] = ch0
    relu_ref[:, 0, :, :] = jnp.maximum(ch0, 0.0)
    conv_ref[:, 1, :, :] = ch1
    relu_ref[:, 1, :, :] = jnp.maximum(ch1, 0.0)
    conv_ref[:, 2, :, :] = ch2
    relu_ref[:, 2, :, :] = jnp.maximum(ch2, 0.0)
    conv_ref[:, 3, :, :] = ch3
    relu_ref[:, 3, :, :] = jnp.maximum(ch3, 0.0)


def _pick_batch_block(N, H, W, Ho, Wo):
    """Largest per-grid-step batch NB that (a) divides N, (b) keeps the
    double-buffered, (8,128)-padded block footprint under the VMEM budget,
    and (c) keeps the grid length >= 2 when N >= 2 (v7x megacore)."""
    pad8 = lambda a: -(-a // 8) * 8
    pad128 = lambda a: -(-a // 128) * 128
    # f32 bytes of one image's slices inside the VMEM blocks (with tile padding):
    #   input (H, W) + two outputs of C_OUT x (Ho, Wo).
    per_img = 4 * (pad8(H) * pad128(W) + 2 * C_OUT * pad8(Ho) * pad128(Wo))
    # ~2x for double buffering plus ~1x for live temporaries (V, Hs, channels).
    cap = max(1, _VMEM_BLOCK_BUDGET_BYTES // (3 * per_img))
    cap = min(cap, max(1, N // 2))          # keep >= 2 grid steps when possible
    nb = 1
    for d in range(1, int(cap) + 1):        # largest divisor of N not above cap
        if N % d == 0:
            nb = d
    return nb


def net_forward(x_nchw):
    """x_nchw: (N, 1, H, W) -> (conv_x, activated_x), both (N, 4, H-3, W-3) f32.

    Matches PyTorch Net.forward with the fixed edge-detection filters; the +/-1
    separable weights are baked into the kernel (no weight operand)."""
    N, C, H, W = x_nchw.shape
    assert C == 1, "Net's conv expects a single input channel"
    Ho, Wo = H - KH + 1, W - KW + 1
    NB = _pick_batch_block(N, H, W, Ho, Wo)

    out_shape = (
        jax.ShapeDtypeStruct((N, C_OUT, Ho, Wo), jnp.float32),
        jax.ShapeDtypeStruct((N, C_OUT, Ho, Wo), jnp.float32),
    )

    conv_x, activated_x = pl.pallas_call(
        _conv_relu_kernel,
        out_shape=out_shape,
        grid=(N // NB,),
        in_specs=[
            # Channel dim squeezed (block size 1): kernel sees (NB, H, W).
            pl.BlockSpec((NB, None, H, W), lambda n: (n, 0, 0, 0)),
        ],
        out_specs=(
            pl.BlockSpec((NB, C_OUT, Ho, Wo), lambda n: (n, 0, 0, 0)),
            pl.BlockSpec((NB, C_OUT, Ho, Wo), lambda n: (n, 0, 0, 0)),
        ),
        compiler_params=pltpu.CompilerParams(
            dimension_semantics=("parallel",),      # shard batch across TCs (v7x)
            vmem_limit_bytes=_VMEM_LIMIT_BYTES,
        ),
    )(x_nchw)

    return conv_x, activated_x


def _make_weight():
    # Same fixed filters as the PyTorch script (used here only for the reference check).
    filter_vals = np.array([[-1, -1, 1, 1],
                            [-1, -1, 1, 1],
                            [-1, -1, 1, 1],
                            [-1, -1, 1, 1]], dtype=np.float32)
    filter_1 = filter_vals
    filter_2 = -filter_1
    filter_3 = filter_1.T
    filter_4 = -filter_3
    filters = np.stack([filter_1, filter_2, filter_3, filter_4], axis=0)   # (4, 4, 4)
    return jnp.asarray(filters, dtype=jnp.float32)[:, None, :, :]          # (4, 1, 4, 4)


if __name__ == "__main__":
    key = jax.random.PRNGKey(0)
    x = jax.random.normal(key, (2, 1, 16, 16), dtype=jnp.float32)   # N=2, C=1, H=W=16

    conv_x, activated_x = net_forward(x)
    conv_x, activated_x = jax.block_until_ready((conv_x, activated_x))

    # Reference check against XLA's conv (identical semantics to nn.Conv2d, VALID, stride 1).
    weight = _make_weight()
    ref_conv = jax.lax.conv_general_dilated(
        x, weight, window_strides=(1, 1), padding="VALID",
        dimension_numbers=("NCHW", "OIHW", "NCHW"))
    ref_relu = jnp.maximum(ref_conv, 0.0)

    assert conv_x.shape == (2, 4, 13, 13) and activated_x.shape == (2, 4, 13, 13)
    np.testing.assert_allclose(np.asarray(conv_x), np.asarray(ref_conv), rtol=1e-5, atol=1e-5)
    np.testing.assert_allclose(np.asarray(activated_x), np.asarray(ref_relu), rtol=1e-5, atol=1e-5)

    print("KERNEL_OK")
</pallas_src>

<mosaic_0001>
module attributes {stable_mosaic.version = 11 : i64} {
  func.func @_conv_relu_kernel(%arg0: i32, %arg1: memref<1x1x16x16xf32, #tpu.memory_space<vmem>>, %arg2: memref<1x4x13x13xf32, #tpu.memory_space<vmem>>, %arg3: memref<1x4x13x13xf32, #tpu.memory_space<vmem>>) attributes {dimension_semantics = [#tpu.dimension_semantics<parallel>], iteration_bounds = array<i64: 2>, scalar_prefetch = 0 : i64, scratch_operands = 0 : i64, tpu.core_type = #tpu.core_type<tc>, window_params = [{transform_indices = @transform_0, window_bounds = array<i64: 1, 1, 16, 16>}, {transform_indices = @transform_1, window_bounds = array<i64: 1, 4, 13, 13>}, {transform_indices = @transform_2, window_bounds = array<i64: 1, 4, 13, 13>}]} {
    %c0 = arith.constant 0 : index
    %c0_0 = arith.constant 0 : index
    %c0_1 = arith.constant 0 : index
    %c0_2 = arith.constant 0 : index
    %0 = vector.load %arg1[%c0, %c0_0, %c0_1, %c0_2] : memref<1x1x16x16xf32, #tpu.memory_space<vmem>>, vector<1x1x16x16xf32>
    %1 = vector.shape_cast %0 : vector<1x1x16x16xf32> to vector<1x16x16xf32>
    %2 = vector.extract_strided_slice %1 {offsets = [0, 0, 0], sizes = [1, 13, 16], strides = [1, 1, 1]} : vector<1x16x16xf32> to vector<1x13x16xf32>
    %3 = vector.extract_strided_slice %1 {offsets = [0, 1, 0], sizes = [1, 13, 16], strides = [1, 1, 1]} : vector<1x16x16xf32> to vector<1x13x16xf32>
    %4 = arith.addf %2, %3 : vector<1x13x16xf32>
    %5 = vector.extract_strided_slice %1 {offsets = [0, 2, 0], sizes = [1, 13, 16], strides = [1, 1, 1]} : vector<1x16x16xf32> to vector<1x13x16xf32>
    %6 = arith.addf %4, %5 : vector<1x13x16xf32>
    %7 = vector.extract_strided_slice %1 {offsets = [0, 3, 0], sizes = [1, 13, 16], strides = [1, 1, 1]} : vector<1x16x16xf32> to vector<1x13x16xf32>
    %8 = arith.addf %6, %7 : vector<1x13x16xf32>
    %9 = vector.extract_strided_slice %1 {offsets = [0, 0, 0], sizes = [1, 16, 13], strides = [1, 1, 1]} : vector<1x16x16xf32> to vector<1x16x13xf32>
    %10 = vector.extract_strided_slice %1 {offsets = [0, 0, 1], sizes = [1, 16, 13], strides = [1, 1, 1]} : vector<1x16x16xf32> to vector<1x16x13xf32>
    %11 = arith.addf %9, %10 : vector<1x16x13xf32>
    %12 = vector.extract_strided_slice %1 {offsets = [0, 0, 2], sizes = [1, 16, 13], strides = [1, 1, 1]} : vector<1x16x16xf32> to vector<1x16x13xf32>
    %13 = arith.addf %11, %12 : vector<1x16x13xf32>
    %14 = vector.extract_strided_slice %1 {offsets = [0, 0, 3], sizes = [1, 16, 13], strides = [1, 1, 1]} : vector<1x16x16xf32> to vector<1x16x13xf32>
    %15 = arith.addf %13, %14 : vector<1x16x13xf32>
    %16 = vector.extract_strided_slice %8 {offsets = [0, 0, 2], sizes = [1, 13, 13], strides = [1, 1, 1]} : vector<1x13x16xf32> to vector<1x13x13xf32>
    %17 = vector.extract_strided_slice %8 {offsets = [0, 0, 3], sizes = [1, 13, 13], strides = [1, 1, 1]} : vector<1x13x16xf32> to vector<1x13x13xf32>
    %18 = arith.addf %16, %17 : vector<1x13x13xf32>
    %19 = vector.extract_strided_slice %8 {offsets = [0, 0, 0], sizes = [1, 13, 13], strides = [1, 1, 1]} : vector<1x13x16xf32> to vector<1x13x13xf32>
    %20 = vector.extract_strided_slice %8 {offsets = [0, 0, 1], sizes = [1, 13, 13], strides = [1, 1, 1]} : vector<1x13x16xf32> to vector<1x13x13xf32>
    %21 = arith.addf %19, %20 : vector<1x13x13xf32>
    %22 = arith.subf %18, %21 : vector<1x13x13xf32>
    %23 = vector.extract_strided_slice %15 {offsets = [0, 2, 0], sizes = [1, 13, 13], strides = [1, 1, 1]} : vector<1x16x13xf32> to vector<1x13x13xf32>
    %24 = vector.extract_strided_slice %15 {offsets = [0, 3, 0], sizes = [1, 13, 13], strides = [1, 1, 1]} : vector<1x16x13xf32> to vector<1x13x13xf32>
    %25 = arith.addf %23, %24 : vector<1x13x13xf32>
    %26 = vector.extract_strided_slice %15 {offsets = [0, 0, 0], sizes = [1, 13, 13], strides = [1, 1, 1]} : vector<1x16x13xf32> to vector<1x13x13xf32>
    %27 = vector.extract_strided_slice %15 {offsets = [0, 1, 0], sizes = [1, 13, 13], strides = [1, 1, 1]} : vector<1x16x13xf32> to vector<1x13x13xf32>
    %28 = arith.addf %26, %27 : vector<1x13x13xf32>
    %29 = arith.subf %25, %28 : vector<1x13x13xf32>
    %cst = arith.constant 0.000000e+00 : f32
    %30 = vector.broadcast %cst : f32 to vector<1x13x13xf32>
    %31 = arith.subf %30, %22 : vector<1x13x13xf32>
    %cst_3 = arith.constant 0.000000e+00 : f32
    %32 = vector.broadcast %cst_3 : f32 to vector<1x13x13xf32>
    %33 = arith.subf %32, %29 : vector<1x13x13xf32>
    %c0_4 = arith.constant 0 : index
    %c0_5 = arith.constant 0 : index
    %c0_6 = arith.constant 0 : index
    %c0_7 = arith.constant 0 : index
    %34 = vector.load %arg2[%c0_4, %c0_5, %c0_6, %c0_7] : memref<1x4x13x13xf32, #tpu.memory_space<vmem>>, vector<1x1x13x13xf32>
    %35 = vector.shape_cast %34 : vector<1x1x13x13xf32> to vector<1x13x13xf32>
    %36 = vector.shape_cast %22 : vector<1x13x13xf32> to vector<1x1x13x13xf32>
    tpu.vector_store %arg2[%c0_4, %c0_5, %c0_6, %c0_7], %36 {strides = array<i32>} : memref<1x4x13x13xf32, #tpu.memory_space<vmem>>, vector<1x1x13x13xf32>,
    %cst_8 = arith.constant 0.000000e+00 : f32
    %37 = vector.broadcast %cst_8 : f32 to vector<1x13x13xf32>
    %38 = arith.maximumf %22, %37 : vector<1x13x13xf32>
    %c0_9 = arith.constant 0 : index
    %c0_10 = arith.constant 0 : index
    %c0_11 = arith.constant 0 : index
    %c0_12 = arith.constant 0 : index
    %39 = vector.load %arg3[%c0_9, %c0_10, %c0_11, %c0_12] : memref<1x4x13x13xf32, #tpu.memory_space<vmem>>, vector<1x1x13x13xf32>
    %40 = vector.shape_cast %39 : vector<1x1x13x13xf32> to vector<1x13x13xf32>
    %41 = vector.shape_cast %38 : vector<1x13x13xf32> to vector<1x1x13x13xf32>
    tpu.vector_store %arg3[%c0_9, %c0_10, %c0_11, %c0_12], %41 {strides = array<i32>} : memref<1x4x13x13xf32, #tpu.memory_space<vmem>>, vector<1x1x13x13xf32>,
    %c0_13 = arith.constant 0 : index
    %c1 = arith.constant 1 : index
    %c0_14 = arith.constant 0 : index
    %c0_15 = arith.constant 0 : index
    %42 = vector.load %arg2[%c0_13, %c1, %c0_14, %c0_15] : memref<1x4x13x13xf32, #tpu.memory_space<vmem>>, vector<1x1x13x13xf32>
    %43 = vector.shape_cast %42 : vector<1x1x13x13xf32> to vector<1x13x13xf32>
    %44 = vector.shape_cast %31 : vector<1x13x13xf32> to vector<1x1x13x13xf32>
    tpu.vector_store %arg2[%c0_13, %c1, %c0_14, %c0_15], %44 {strides = array<i32>} : memref<1x4x13x13xf32, #tpu.memory_space<vmem>>, vector<1x1x13x13xf32>,
    %cst_16 = arith.constant 0.000000e+00 : f32
    %45 = vector.broadcast %cst_16 : f32 to vector<1x13x13xf32>
    %46 = arith.maximumf %31, %45 : vector<1x13x13xf32>
    %c0_17 = arith.constant 0 : index
    %c1_18 = arith.constant 1 : index
    %c0_19 = arith.constant 0 : index
    %c0_20 = arith.constant 0 : index
    %47 = vector.load %arg3[%c0_17, %c1_18, %c0_19, %c0_20] : memref<1x4x13x13xf32, #tpu.memory_space<vmem>>, vector<1x1x13x13xf32>
    %48 = vector.shape_cast %47 : vector<1x1x13x13xf32> to vector<1x13x13xf32>
    %49 = vector.shape_cast %46 : vector<1x13x13xf32> to vector<1x1x13x13xf32>
    tpu.vector_store %arg3[%c0_17, %c1_18, %c0_19, %c0_20], %49 {strides = array<i32>} : memref<1x4x13x13xf32, #tpu.memory_space<vmem>>, vector<1x1x13x13xf32>,
    %c0_21 = arith.constant 0 : index
    %c2 = arith.constant 2 : index
    %c0_22 = arith.constant 0 : index
    %c0_23 = arith.constant 0 : index
    %50 = vector.load %arg2[%c0_21, %c2, %c0_22, %c0_23] : memref<1x4x13x13xf32, #tpu.memory_space<vmem>>, vector<1x1x13x13xf32>
    %51 = vector.shape_cast %50 : vector<1x1x13x13xf32> to vector<1x13x13xf32>
    %52 = vector.shape_cast %29 : vector<1x13x13xf32> to vector<1x1x13x13xf32>
    tpu.vector_store %arg2[%c0_21, %c2, %c0_22, %c0_23], %52 {strides = array<i32>} : memref<1x4x13x13xf32, #tpu.memory_space<vmem>>, vector<1x1x13x13xf32>,
    %cst_24 = arith.constant 0.000000e+00 : f32
    %53 = vector.broadcast %cst_24 : f32 to vector<1x13x13xf32>
    %54 = arith.maximumf %29, %53 : vector<1x13x13xf32>
    %c0_25 = arith.constant 0 : index
    %c2_26 = arith.constant 2 : index
    %c0_27 = arith.constant 0 : index
    %c0_28 = arith.constant 0 : index
    %55 = vector.load %arg3[%c0_25, %c2_26, %c0_27, %c0_28] : memref<1x4x13x13xf32, #tpu.memory_space<vmem>>, vector<1x1x13x13xf32>
    %56 = vector.shape_cast %55 : vector<1x1x13x13xf32> to vector<1x13x13xf32>
    %57 = vector.shape_cast %54 : vector<1x13x13xf32> to vector<1x1x13x13xf32>
    tpu.vector_store %arg3[%c0_25, %c2_26, %c0_27, %c0_28], %57 {strides = array<i32>} : memref<1x4x13x13xf32, #tpu.memory_space<vmem>>, vector<1x1x13x13xf32>,
    %c0_29 = arith.constant 0 : index
    %c3 = arith.constant 3 : index
    %c0_30 = arith.constant 0 : index
    %c0_31 = arith.constant 0 : index
    %58 = vector.load %arg2[%c0_29, %c3, %c0_30, %c0_31] : memref<1x4x13x13xf32, #tpu.memory_space<vmem>>, vector<1x1x13x13xf32>
    %59 = vector.shape_cast %58 : vector<1x1x13x13xf32> to vector<1x13x13xf32>
    %60 = vector.shape_cast %33 : vector<1x13x13xf32> to vector<1x1x13x13xf32>
    tpu.vector_store %arg2[%c0_29, %c3, %c0_30, %c0_31], %60 {strides = array<i32>} : memref<1x4x13x13xf32, #tpu.memory_space<vmem>>, vector<1x1x13x13xf32>,
    %cst_32 = arith.constant 0.000000e+00 : f32
    %61 = vector.broadcast %cst_32 : f32 to vector<1x13x13xf32>
    %62 = arith.maximumf %33, %61 : vector<1x13x13xf32>
    %c0_33 = arith.constant 0 : index
    %c3_34 = arith.constant 3 : index
    %c0_35 = arith.constant 0 : index
    %c0_36 = arith.constant 0 : index
    %63 = vector.load %arg3[%c0_33, %c3_34, %c0_35, %c0_36] : memref<1x4x13x13xf32, #tpu.memory_space<vmem>>, vector<1x1x13x13xf32>
    %64 = vector.shape_cast %63 : vector<1x1x13x13xf32> to vector<1x13x13xf32>
    %65 = vector.shape_cast %62 : vector<1x13x13xf32> to vector<1x1x13x13xf32>
    tpu.vector_store %arg3[%c0_33, %c3_34, %c0_35, %c0_36], %65 {strides = array<i32>} : memref<1x4x13x13xf32, #tpu.memory_space<vmem>>, vector<1x1x13x13xf32>,
    return
  }
  func.func @transform_0(%arg0: i32) -> (i32, i32, i32, i32) {
    %c0_i32 = arith.constant 0 : i32
    %c0_i32_0 = arith.constant 0 : i32
    %c0_i32_1 = arith.constant 0 : i32
    %c0_i32_2 = arith.constant 0 : i32
    return %arg0, %c0_i32, %c0_i32_0, %c0_i32_1 : i32, i32, i32, i32
  }
  func.func @transform_1(%arg0: i32) -> (i32, i32, i32, i32) {
    %c0_i32 = arith.constant 0 : i32
    %c0_i32_0 = arith.constant 0 : i32
    %c0_i32_1 = arith.constant 0 : i32
    %c0_i32_2 = arith.constant 0 : i32
    return %arg0, %c0_i32, %c0_i32_0, %c0_i32_1 : i32, i32, i32, i32
  }
  func.func @transform_2(%arg0: i32) -> (i32, i32, i32, i32) {
    %c0_i32 = arith.constant 0 : i32
    %c0_i32_0 = arith.constant 0 : i32
    %c0_i32_1 = arith.constant 0 : i32
    %c0_i32_2 = arith.constant 0 : i32
    return %arg0, %c0_i32, %c0_i32_0, %c0_i32_1 : i32, i32, i32, i32
  }
}

</mosaic_0001>

<llo_original>
// kernel: tpu_custom_call.1
$region0: #{tpu_custom_call.1}
  #allocation0 [shape = 'u32[]', space=smem, size = 0x4, offset = 0x4, fixed_abs, tag = 'smem constant byte address 0x4 - core index']
  #allocation1 [shape = 'u32[144,128]{1,0:T(1,128)}', space=vmem, size = 0x12000, scoped, tag = 'internal scratch']
  %s0 = inlined_call_operand.hbm [shape: f32[2,1,16,16], index: 0, kind: input, shape index: {}]
  %s1 = inlined_call_operand.vmem [shape: f32[2,4,13,13], index: 1, kind: output, shape index: {0}]
  %s2 = inlined_call_operand.vmem [shape: f32[2,4,13,13], index: 2, kind: output, shape index: {1}]
  %3 = xla_tuple %s1, %s2
  %s4 = sld [smem:[#allocation0]]
  $region49: #{tpu_custom_call.1} parent=0
    _
  %s6 = ssub.s32 1, %s4
  %s7 = scalar_select 0, %s6, %s4
  $region1: #{tpu_custom_call.1} parent=0
    #allocation2 [shape = 'u8[16384]{0}', space=vmem, size = 0x4000, scoped, tag = 'input window, operand 0']
    #allocation3 [shape = 's32[2]{0}', space=sflag, size = 0x8, scoped, tag = 'scoped memory for tpu_custom_call.1']
    %8 = vsyncpa [#allocation3], 0
    %s9 = scalar_lea.sflag [#allocation3], 1
    %10 = vsyncpa %s9, 0
    loop: start=0, step=1, limit=4
    $region2: #{tpu_custom_call.1} parent=1 // loop_pre_header
      _
    $region3: #{tpu_custom_call.1} parent=1 // loop_header
      %s12 = sphi 0, %s16
      %p13 = scmp.ge.s32.totalorder %s12, 4
      %s22 = sphi 0, %s24
      %s25 = sphi 0, %s22
      %s26 = sphi 0, %s25
      %s42 = sphi 0, %s26
      %s48 = sphi 0, %s50
      %s51 = sphi 0, %s48
      %s52 = sphi 0, %s51
      %s68 = sphi 0, %s52
      %s74 = sphi 0, %s76
      %s77 = sphi 0, %s74
      %s78 = sphi 0, %s77
      %s94 = sphi 0, %s78
    $region4: #{tpu_custom_call.1} parent=1 // loop_header_branch
      %15 = sbr.rel (%p13) target = $region8
    $region5: #{tpu_custom_call.1} parent=1 // loop_body
      %s17 = ssub.s32 %s12, 1
      %s18 = ssub.s32 %s12, 2
      %s19 = sadd.s32 %s12, 1
      %s20 = ssub.s32 %s12, %s19
      %p21 = scmp.eq.s32.totalorder %s20, 0
      %s23 = sadd.s32 %s22, 1
      %s24 = scalar_select %p21, %s22, %s23
      %p27 = pneg %p21
      %p28 = scmp.eq.s32.totalorder %s12, 1
      %p29 = por %p27, %p28
      %p30 = scmp.ne.s32.totalorder %s22, %s25
      %p31 = scmp.eq.s32.totalorder %s12, 0
      %p32 = por %p30, %p31
      %p33 = scmp.ne.s32.totalorder %s22, %s25
      %p34 = scmp.eq.s32.totalorder %s17, 1
      %p35 = por %p33, %p34
      %p36 = scmp.ne.s32.totalorder %s25, %s26
      %p37 = scmp.eq.s32.totalorder %s17, 0
      %p38 = por %p36, %p37
      %p39 = scmp.ne.s32.totalorder %s25, %s26
      %p40 = scmp.eq.s32.totalorder %s18, 1
      %p41 = por %p39, %p40
      %p43 = scmp.ne.s32.totalorder %s26, %s42
      %p44 = scmp.eq.s32.totalorder %s18, 0
      %p45 = por %p43, %p44
      %s46 = ssub.s32 %s12, %s19
      %p47 = scmp.eq.s32.totalorder %s46, 0
      %s49 = sadd.s32 %s48, 1
      %s50 = scalar_select %p47, %s48, %s49
      %p53 = pneg %p47
      %p54 = scmp.eq.s32.totalorder %s12, 1
      %p55 = por %p53, %p54
      %p56 = scmp.ne.s32.totalorder %s48, %s51
      %p57 = scmp.eq.s32.totalorder %s12, 0
      %p58 = por %p56, %p57
      %p59 = scmp.ne.s32.totalorder %s48, %s51
      %p60 = scmp.eq.s32.totalorder %s17, 1
      %p61 = por %p59, %p60
      %p62 = scmp.ne.s32.totalorder %s51, %s52
      %p63 = scmp.eq.s32.totalorder %s17, 0
      %p64 = por %p62, %p63
      %p65 = scmp.ne.s32.totalorder %s51, %s52
      %p66 = scmp.eq.s32.totalorder %s18, 1
      %p67 = por %p65, %p66
      %p69 = scmp.ne.s32.totalorder %s52, %s68
      %p70 = scmp.eq.s32.totalorder %s18, 0
      %p71 = por %p69, %p70
      %s72 = ssub.s32 %s12, %s19
      %p73 = scmp.eq.s32.totalorder %s72, 0
      %s75 = sadd.s32 %s74, 1
      %s76 = scalar_select %p73, %s74, %s75
      %p79 = pneg %p73
      %p80 = scmp.eq.s32.totalorder %s12, 1
      %p81 = por %p79, %p80
      %p82 = scmp.ne.s32.totalorder %s74, %s77
      %p83 = scmp.eq.s32.totalorder %s12, 0
      %p84 = por %p82, %p83
      %p85 = scmp.ne.s32.totalorder %s74, %s77
      %p86 = scmp.eq.s32.totalorder %s17, 1
      %p87 = por %p85, %p86
      %p88 = scmp.ne.s32.totalorder %s77, %s78
      %p89 = scmp.eq.s32.totalorder %s17, 0
      %p90 = por %p88, %p89
      %p91 = scmp.ne.s32.totalorder %s77, %s78
      %p92 = scmp.eq.s32.totalorder %s18, 1
      %p93 = por %p91, %p92
      %p95 = scmp.ne.s32.totalorder %s78, %s94
      %p96 = scmp.eq.s32.totalorder %s18, 0
      %p97 = por %p95, %p96
      %p98 = scmp.le.s32.totalorder 1, %s12
      %p99 = scmp.lt.s32.totalorder %s12, 3
      %p100 = pnand %p98, %p99
      %p101 = pneg %p100
      // Predicated region
      $region9: #{tpu_custom_call.1} parent=5 // pred_check
        _
      $region10: #{tpu_custom_call.1} parent=5 // pred_check_branch
        %103 = sbr.rel (%p100) target = $region12
      $region11: #{tpu_custom_call.1} parent=5 // pred_region
        %s104 = ssub.s32 %s12, 1
      $region12: #{tpu_custom_call.1} parent=5 // pred_fallthru
        _
      %p105 = scmp.lt.s32.totalorder %s12, 2
      // Predicated region
      $region13: #{tpu_custom_call.1} parent=5 // pred_check
        %p106 = pneg %p105
      $region14: #{tpu_custom_call.1} parent=5 // pred_check_branch
        %108 = sbr.rel (%p106) target = $region16
      $region15: #{tpu_custom_call.1} parent=5 // pred_region
        // Predicated region
        $region17: #{tpu_custom_call.1} parent=15 // pred_check
          %p109 = pneg %p32
        $region18: #{tpu_custom_call.1} parent=15 // pred_check_branch
          %111 = sbr.rel (%p109) target = $region20
        $region19: #{tpu_custom_call.1} parent=15 // pred_region
          %s112 = sand.u32 %s22, 1
          %s113 = scalar_lea.sflag [#allocation3], %s112
          %s114 = sand.u32 %s22, 1
          %s115 = smul.addr %s114, 16
          %s116 = scalar_lea.vmem [#allocation2], %s115
          %s118 = ssub.s32 256, 256
          %119 = vsyncadd %s113, %s118
          %s120 = smul.addr %s12, 2
          %s121 = smul.addr %s120, 128
          %s122 = scalar_lea.hbm %s0, %s121
          %s123 = sshll.u32 %s116, 4
          %s124 = int_to_ptr.vmem [resolvable:$true] %s123
          %129 = dma.hbm_to_vmem [thread:$0]  %s122, 256, %s124, %s113, 128, 128, 8
        $region20: #{tpu_custom_call.1} parent=15 // pred_fallthru
          _
      $region16: #{tpu_custom_call.1} parent=5 // pred_fallthru
        _
      %p130 = scmp.le.s32.totalorder 1, %s12
      %p131 = scmp.lt.s32.totalorder %s12, 3
      %p132 = pnand %p130, %p131
      %p133 = pneg %p132
      // Predicated region
      $region21: #{tpu_custom_call.1} parent=5 // pred_check
        _
      $region22: #{tpu_custom_call.1} parent=5 // pred_check_branch
        %135 = sbr.rel (%p132) target = $region24
      $region23: #{tpu_custom_call.1} parent=5 // pred_region
        %s136 = ssub.s32 %s12, 1
        %s137 = sand.u32 %s25, 1
        %s138 = scalar_lea.sflag [#allocation3], %s137
        %s139 = sand.u32 %s25, 1
        %s140 = smul.addr %s139, 16
        %s141 = scalar_lea.vmem [#allocation2], %s140
        // Predicated region
        $region25: #{tpu_custom_call.1} parent=23 // pred_check
          %p142 = pneg %p38
        $region26: #{tpu_custom_call.1} parent=23 // pred_check_branch
          %144 = sbr.rel (%p142) target = $region28
        $region27: #{tpu_custom_call.1} parent=23 // pred_region
          %145 = dma.done %s138, 256
        $region28: #{tpu_custom_call.1} parent=23 // pred_fallthru
          _
        %s146 = sand.u32 %s25, 1
        %s147 = scalar_lea.sflag [#allocation3], %s146
        %s148 = sand.u32 %s25, 1
        %s149 = smul.addr %s148, 16
        %s150 = scalar_lea.vmem [#allocation2], %s149
        %p151 = pneg %p38
        %p152 = pneg %p35
        %p153 = pneg %p64
        %p154 = pneg %p61
        %p155 = scmp.lt.s32.totalorder %s17, 1
        %s156 = scalar_select %p155, %s17, 1
        %s157 = smul.addr %s156, 8
        %s158 = smul.addr %s157, 8
        %s159 = scalar_lea.vmem %s1, %s158
        %p160 = pneg %p90
        %p161 = pneg %p87
        %p162 = scmp.lt.s32.totalorder %s17, 1
        %s163 = scalar_select %p162, %s17, 1
        %s164 = smul.addr %s163, 8
        %s165 = smul.addr %s164, 8
        %s166 = scalar_lea.vmem %s2, %s165
        %p167 = scmp.lt.s32.totalorder %s17, 1
        %s168 = scalar_select %p167, %s17, 1
        %s169 = smul.addr %s168, 8
        %s170 = smul.addr %s169, 8
        %s171 = scalar_lea.vmem %s1, %s170
        %p172 = scmp.lt.s32.totalorder %s17, 1
        %s173 = scalar_select %p172, %s17, 1
        %s174 = smul.addr %s173, 8
        %s175 = smul.addr %s174, 8
        %s176 = scalar_lea.vmem %s2, %s175
        %v177 = vld [vmem:[%s141] sm:$0xff]
        %v178 = vld [vmem:[%s141 + $0x8] sm:$0xff]
        %vm181 = vcmask 1046528
        %v182 = vrot.slane %v177, 1
        %v183 = vrot.slane %v178, 1
        %v184 = vsel %vm181, %v182, %v183
        %v187 = vadd.f32 %v177, %v184
        %v188 = vadd.f32 %v178, %v183
        %vm189 = vcmask 1045504
        %v190 = vrot.slane %v177, 2
        %v191 = vrot.slane %v178, 2
        %v192 = vsel %vm189, %v190, %v191
        %v195 = vadd.f32 %v187, %v192
        %v196 = vadd.f32 %v188, %v191
        %vm197 = vcmask 1044480
        %v198 = vrot.slane %v177, 3
        %v199 = vrot.slane %v178, 3
        %v200 = vsel %vm197, %v198, %v199
        %v203 = vadd.f32 %v195, %v200
        %v204 = vadd.f32 %v196, %v199
        %205 = vrot.lane.b32.xlu0 %v177, 127
        %v206 = vpop.permute.xlu0 %205
        %207 = vrot.lane.b32.xlu0 %v178, 127
        %v208 = vpop.permute.xlu0 %207
        %v211 = vadd.f32 %v177, %v206
        %v212 = vadd.f32 %v178, %v208
        %213 = vrot.lane.b32.xlu0 %v177, 126
        %v214 = vpop.permute.xlu0 %213
        %215 = vrot.lane.b32.xlu0 %v178, 126
        %v216 = vpop.permute.xlu0 %215
        %v219 = vadd.f32 %v211, %v214
        %v220 = vadd.f32 %v212, %v216
        %221 = vrot.lane.b32.xlu0 %v177, 125
        %v222 = vpop.permute.xlu0 %221
        %223 = vrot.lane.b32.xlu0 %v178, 125
        %v224 = vpop.permute.xlu0 %223
        %v227 = vadd.f32 %v219, %v222
        %v228 = vadd.f32 %v220, %v224
        %231 = vrot.lane.b32.xlu0 %v203, 127
        %v232 = vpop.permute.xlu0 %231
        %233 = vrot.lane.b32.xlu0 %v204, 127
        %v234 = vpop.permute.xlu0 %233
        %v237 = vadd.f32 %v203, %v232
        %v238 = vadd.f32 %v204, %v234
        %241 = vrot.lane.b32.xlu0 %v237, 2
        %v242 = vpop.permute.xlu0 %241
        %243 = vrot.lane.b32.xlu0 %v238, 2
        %v244 = vpop.permute.xlu0 %243
        %v247 = vsub.f32 %v237, %v242
        %v248 = vsub.f32 %v238, %v244
        %v251 = vrot.slane %v227, 1
        %v252 = vrot.slane %v228, 1
        %v253 = vsel %vm181, %v251, %v252
        %v256 = vadd.f32 %v227, %v253
        %v257 = vadd.f32 %v228, %v252
        %vm260 = vcmask 1041408
        %v261 = vrot.slane %v256, 6
        %v262 = vrot.slane %v257, 6
        %v263 = vsel %vm260, %v261, %v262
        %v266 = vsub.f32 %v256, %v261
        %v267 = vsub.f32 %v257, %v263
        %v268 = vsub.f32 0.0, %v247
        %v269 = vsub.f32 0.0, %v248
        %v270 = vsub.f32 0.0, %v266
        %v271 = vsub.f32 0.0, %v267
        %274 = vrot.lane.b32.xlu0 %v247, 126
        %v275 = vpop.permute.xlu0 %274
        %276 = vrot.lane.b32.xlu0 %v248, 126
        %v277 = vpop.permute.xlu0 %276
        %vm280 = vcmask 105472
        %281 = vst.msk [vmem:[%s171] sm:$0xff] %vm280, %v275
        %vm282 = vcmask 102400
        %283 = vst.msk [vmem:[%s171 + $0x8] sm:$0x1f] %vm282, %v277
        %v284 = vmax.f32 %v247, 0.0
        %v285 = vmax.f32 %v248, 0.0
        %288 = vrot.lane.b32.xlu0 %v284, 126
        %v289 = vpop.permute.xlu0 %288
        %290 = vrot.lane.b32.xlu0 %v285, 126
        %v291 = vpop.permute.xlu0 %290
        %294 = vst.msk [vmem:[%s176] sm:$0xff] %vm280, %v289
        %295 = vst.msk [vmem:[%s176 + $0x8] sm:$0x1f] %vm282, %v291
        %298 = vrot.lane.b32.xlu0 %v268, 126
        %v299 = vpop.permute.xlu0 %298
        %300 = vrot.lane.b32.xlu0 %v269, 126
        %v301 = vpop.permute.xlu0 %300
        %s304 = scalar_lea.vmem %s171, 16
        %305 = vst.msk [vmem:[%s304] sm:$0xff] %vm280, %v299
        %306 = vst.msk [vmem:[%s304 + $0x8] sm:$0x1f] %vm282, %v301
        %v307 = vmax.f32 %v268, 0.0
        %v308 = vmax.f32 %v269, 0.0
        %311 = vrot.lane.b32.xlu0 %v307, 126
        %v312 = vpop.permute.xlu0 %311
        %313 = vrot.lane.b32.xlu0 %v308, 126
        %v314 = vpop.permute.xlu0 %313
        %s317 = scalar_lea.vmem %s176, 16
        %318 = vst.msk [vmem:[%s317] sm:$0xff] %vm280, %v312
        %319 = vst.msk [vmem:[%s317 + $0x8] sm:$0x1f] %vm282, %v314
        %s320 = scalar_lea.vmem %s171, 32
        %vm321 = vcmask 105474
        %322 = vst.msk [vmem:[%s320 - $0x2] sm:$0xfc] %vm321, %v266
        %vm323 = vcmask 104448
        %324 = vst.msk [vmem:[%s320 + $0x6] sm:$0x7f] %vm323, %v267
        %v325 = vmax.f32 %v266, 0.0
        %v326 = vmax.f32 %v267, 0.0
        %s327 = scalar_lea.vmem %s176, 32
        %328 = vst.msk [vmem:[%s327 - $0x2] sm:$0xfc] %vm321, %v325
        %329 = vst.msk [vmem:[%s327 + $0x6] sm:$0x7f] %vm323, %v326
        %s330 = scalar_lea.vmem %s171, 48
        %331 = vst.msk [vmem:[%s330 - $0x2] sm:$0xfc] %vm321, %v270
        %332 = vst.msk [vmem:[%s330 + $0x6] sm:$0x7f] %vm323, %v271
        %v333 = vmax.f32 %v270, 0.0
        %v334 = vmax.f32 %v271, 0.0
        %s335 = scalar_lea.vmem %s176, 48
        %336 = vst.msk [vmem:[%s335 - $0x2] sm:$0xfc] %vm321, %v333
        %337 = vst.msk [vmem:[%s335 + $0x6] sm:$0x7f] %vm323, %v334
        %p338 = scmp.lt.s32.totalorder %s17, 1
        %s339 = scalar_select %p338, %s17, 1
        %s340 = smul.addr %s339, 8
        %s341 = smul.addr %s340, 8
        %s342 = scalar_lea.vmem %s1, %s341
        %p343 = scmp.lt.s32.totalorder %s17, 1
        %s344 = scalar_select %p343, %s17, 1
        %s345 = smul.addr %s344, 8
        %s346 = smul.addr %s345, 8
        %s347 = scalar_lea.vmem %s2, %s346
        // Predicated region
        $region29: #{tpu_custom_call.1} parent=23 // pred_check
          %p348 = pneg %p61
        $region30: #{tpu_custom_call.1} parent=23 // pred_check_branch
          %350 = sbr.rel (%p348) target = $region32
        $region31: #{tpu_custom_call.1} parent=23 // pred_region
          _
        $region32: #{tpu_custom_call.1} parent=23 // pred_fallthru
          _
        // Predicated region
        $region33: #{tpu_custom_call.1} parent=23 // pred_check
          %p351 = pneg %p87
        $region34: #{tpu_custom_call.1} parent=23 // pred_check_branch
          %353 = sbr.rel (%p351) target = $region36
        $region35: #{tpu_custom_call.1} parent=23 // pred_region
          _
        $region36: #{tpu_custom_call.1} parent=23 // pred_fallthru
          _
      $region24: #{tpu_custom_call.1} parent=5 // pred_fallthru
        _
      %p354 = scmp.le.s32.totalorder 2, %s12
      // Predicated region
      $region37: #{tpu_custom_call.1} parent=5 // pred_check
        %p355 = pneg %p354
      $region38: #{tpu_custom_call.1} parent=5 // pred_check_branch
        %357 = sbr.rel (%p355) target = $region40
      $region39: #{tpu_custom_call.1} parent=5 // pred_region
        %s358 = ssub.s32 %s12, 2
        // Predicated region
        $region41: #{tpu_custom_call.1} parent=39 // pred_check
          %p359 = pneg %p67
        $region42: #{tpu_custom_call.1} parent=39 // pred_check_branch
          %361 = sbr.rel (%p359) target = $region44
        $region43: #{tpu_custom_call.1} parent=39 // pred_region
          %p362 = scmp.lt.s32.totalorder %s18, 1
          %s363 = scalar_select %p362, %s18, 1
          %s364 = smul.addr %s363, 8
          %s365 = smul.addr %s364, 8
          %s366 = scalar_lea.vmem %s1, %s365
        $region44: #{tpu_custom_call.1} parent=39 // pred_fallthru
          _
        // Predicated region
        $region45: #{tpu_custom_call.1} parent=39 // pred_check
          %p367 = pneg %p93
        $region46: #{tpu_custom_call.1} parent=39 // pred_check_branch
          %369 = sbr.rel (%p367) target = $region48
        $region47: #{tpu_custom_call.1} parent=39 // pred_region
          %p370 = scmp.lt.s32.totalorder %s18, 1
          %s371 = scalar_select %p370, %s18, 1
          %s372 = smul.addr %s371, 8
          %s373 = smul.addr %s372, 8
          %s374 = scalar_lea.vmem %s2, %s373
        $region48: #{tpu_custom_call.1} parent=39 // pred_fallthru
          _
      $region40: #{tpu_custom_call.1} parent=5 // pred_fallthru
        _
    $region6: #{tpu_custom_call.1} parent=1 // loop_footer
      %s16 = sadd.s32 1, %s12
    $region7: #{tpu_custom_call.1} parent=1 // loop_footer_branch
      %11 = sbr.rel target = $region3
    $region8: #{tpu_custom_call.1} parent=1 // loop_exit
      _
    %375 = vsyncpa [#allocation3], 1
    %s376 = scalar_lea.sflag [#allocation3], 1
    %377 = vsyncpa %s376, 1

</llo_original>
